<compile_context>
chip_gen: v7x
topology: tpu7x:2x2x1
jax: 0.10.0
libtpu: 0.0.40
codegen_flags: <defaults>
</compile_context>

<pallas_src>
import math

import jax
import jax.numpy as jnp
from jax.experimental import pallas as pl
from jax.experimental.pallas import tpu as pltpu

_SQRT_2PI = 2.5066282746310002
NCORES = 2  # leading "parallel" grid axis (both TCs on v7x; harmless loop elsewhere)


def _round_up(x, m):
    return ((x + m - 1) // m) * m


def _choose_tile(S, V):
    # (a) heaviest pass (prep: 13 B/voxel in+out, double-buffered) must stay
    #     ~<= 10 MiB of scoped VMEM so default limits work on every generation;
    # (b) big tiles amortize the ~0.35us/step grid overhead;
    # (c) keep lane padding waste (< NCORES*tv voxels/slice) small for modest V.
    cap = 8192
    while cap > 128 and 26 * S * cap > (10 << 20):
        cap //= 2
    per_core = _round_up(-(-max(V, 1) // NCORES), 128)
    tv = min(cap, per_core)
    while tv > 128 and NCORES * tv > max(V // 8, 128):
        tv //= 2
    return tv


# ----------------------------------------------------------------------------
# Pallas kernels (voxel-level hot path)
# ----------------------------------------------------------------------------
def _logistic_p(err, s_half, log_k):
    # p = c*g / (c*g + (1-c)*m), g = Normal(0, sigma).pdf(err), rewritten as a
    # logistic: one mul, one square, one add, one exp, one divide per element.
    z = err * s_half          # z^2 == 0.5*(err/sigma)^2
    zz = z * z
    return zz, 1.0 / (1.0 + jnp.exp(zz + log_k))


def _prep_init_kernel(err_ref, w_ref, sm_ref, code_ref, stats_ref, scr):
    # code bits: 1 -> w > 0 (low), 2 -> w > 0.99 (high), 4 -> slices_mask.
    # per-slice stats cols:
    #   0 sum(err*high)   1 sum(err^2*high)   2 |high|   3 |slices_mask|
    #   4 |high&mask|     5 max(err|high&mask)  6 min(err|high&mask)   7 unused
    ns = scr.shape[0]

    @pl.when(pl.program_id(1) == 0)
    def _():
        scr[...] = jnp.zeros_like(scr)
        scr[:, 5:6] = jnp.full((ns, 1), -jnp.inf, jnp.float32)
        scr[:, 6:7] = jnp.full((ns, 1), jnp.inf, jnp.float32)

    err = err_ref[...]
    w = w_ref[...]
    sm = sm_ref[...]
    low = w > 0.0
    high = w > 0.99
    smv = sm > 0.5
    code = (low.astype(jnp.int32) + 2 * high.astype(jnp.int32)
            + 4 * smv.astype(jnp.int32))
    code_ref[...] = code.astype(jnp.int8)

    hf = high.astype(jnp.float32)
    meff = high & smv
    scr[:, 0:1] += jnp.sum(err * hf, axis=1, keepdims=True)
    scr[:, 1:2] += jnp.sum(err * err * hf, axis=1, keepdims=True)
    scr[:, 2:3] += jnp.sum(hf, axis=1, keepdims=True)
    scr[:, 3:4] += jnp.sum(smv.astype(jnp.float32), axis=1, keepdims=True)
    scr[:, 4:5] += jnp.sum(meff.astype(jnp.float32), axis=1, keepdims=True)
    scr[:, 5:6] = jnp.maximum(
        scr[:, 5:6],
        jnp.max(jnp.where(meff, err, -jnp.inf), axis=1, keepdims=True))
    scr[:, 6:7] = jnp.minimum(
        scr[:, 6:7],
        jnp.min(jnp.where(meff, err, jnp.inf), axis=1, keepdims=True))

    @pl.when(pl.program_id(1) == pl.num_programs(1) - 1)
    def _():
        stats_ref[...] = scr[...][None]


def _em_iter_kernel(params_ref, err_ref, code_ref, stats_ref, scr):
    # Hot pass: only the iteration-dependent GLOBAL statistics.
    # global stats cols: 0 sum(p | high&mask)   1 sum(z^2 * p | high&mask)
    @pl.when(pl.program_id(1) == 0)
    def _():
        scr[...] = jnp.zeros_like(scr)

    s_half = params_ref[0]
    log_k = params_ref[1]
    err = err_ref[...]
    ci = code_ref[...].astype(jnp.int32)
    meff = ci >= 6                       # high & slices_mask (bits 2 and 4 both set)

    zz, p = _logistic_p(err, s_half, log_k)
    pm = jnp.where(meff, p, 0.0)

    scr[0:1, 0:1] += jnp.sum(jnp.sum(pm, axis=1, keepdims=True),
                             axis=0, keepdims=True)
    scr[0:1, 1:2] += jnp.sum(jnp.sum(zz * pm, axis=1, keepdims=True),
                             axis=0, keepdims=True)

    @pl.when(pl.program_id(1) == pl.num_programs(1) - 1)
    def _():
        stats_ref[...] = scr[...][None]


def _finalize_kernel(params_ref, err_ref, code_ref, p_ref, stats_ref, scr):
    # p_ref: per-voxel posterior (0 outside mask_voxel_low);
    # stats col 0: per-slice sum((1 - p)^2 * high)
    @pl.when(pl.program_id(1) == 0)
    def _():
        scr[...] = jnp.zeros_like(scr)

    s_half = params_ref[0]
    log_k = params_ref[1]
    err = err_ref[...]
    ci = code_ref[...].astype(jnp.int32)
    low = (ci & 1) != 0
    high = (ci & 2) != 0

    _, p = _logistic_p(err, s_half, log_k)
    p = jnp.where(low, p, 0.0)
    p_ref[...] = p

    d = 1.0 - p
    scr[...] += jnp.sum(jnp.where(high, d * d, 0.0), axis=1, keepdims=True)

    @pl.when(pl.program_id(1) == pl.num_programs(1) - 1)
    def _():
        stats_ref[...] = scr[...][None]


# ----------------------------------------------------------------------------
# pallas_call wrappers
# ----------------------------------------------------------------------------
def _vox_spec(S, tv, npc):
    return pl.BlockSpec((S, tv), lambda c, v: (0, c * npc + v))


def _call_prep_init(err2d, w2d, sm2d, tv):
    S, Vp = err2d.shape
    npc = (Vp // tv) // NCORES
    return pl.pallas_call(
        _prep_init_kernel,
        out_shape=(
            jax.ShapeDtypeStruct((S, Vp), jnp.int8),
            jax.ShapeDtypeStruct((NCORES, S, 8), jnp.float32),
        ),
        grid=(NCORES, npc),
        in_specs=[_vox_spec(S, tv, npc) for _ in range(3)],
        out_specs=(
            _vox_spec(S, tv, npc),
            pl.BlockSpec((1, S, 8), lambda c, v: (c, 0, 0)),
        ),
        scratch_shapes=[pltpu.VMEM((S, 8), jnp.float32)],
        compiler_params=pltpu.CompilerParams(
            dimension_semantics=("parallel", "arbitrary")),
    )(err2d, w2d, sm2d)


def _call_iter_stats(params, err2d, code2d, tv):
    S, Vp = err2d.shape
    npc = (Vp // tv) // NCORES
    return pl.pallas_call(
        _em_iter_kernel,
        out_shape=jax.ShapeDtypeStruct((NCORES, 1, 8), jnp.float32),
        grid=(NCORES, npc),
        in_specs=[pl.BlockSpec(memory_space=pltpu.MemorySpace.SMEM),
                  _vox_spec(S, tv, npc), _vox_spec(S, tv, npc)],
        out_specs=pl.BlockSpec((1, 1, 8), lambda c, v: (c, 0, 0)),
        scratch_shapes=[pltpu.VMEM((1, 8), jnp.float32)],
        compiler_params=pltpu.CompilerParams(
            dimension_semantics=("parallel", "arbitrary")),
    )(params, err2d, code2d)


def _call_finalize(params, err2d, code2d, tv):
    S, Vp = err2d.shape
    npc = (Vp // tv) // NCORES
    return pl.pallas_call(
        _finalize_kernel,
        out_shape=(
            jax.ShapeDtypeStruct((S, Vp), jnp.float32),
            jax.ShapeDtypeStruct((NCORES, S, 1), jnp.float32),
        ),
        grid=(NCORES, npc),
        in_specs=[pl.BlockSpec(memory_space=pltpu.MemorySpace.SMEM),
                  _vox_spec(S, tv, npc), _vox_spec(S, tv, npc)],
        out_specs=(
            _vox_spec(S, tv, npc),
            pl.BlockSpec((1, S, 1), lambda c, v: (c, 0, 0)),
        ),
        scratch_shapes=[pltpu.VMEM((S, 1), jnp.float32)],
        compiler_params=pltpu.CompilerParams(
            dimension_semantics=("parallel", "arbitrary")),
    )(params, err2d, code2d)


def _pack_params(sigma, m, c):
    # p = sigmoid(-(0.5*(err/sigma)^2 + log_k)) with
    # log_k = log((1-c)*m*sigma*sqrt(2*pi)/c); pass sqrt(0.5)/sigma and log_k.
    sigma = jnp.asarray(sigma, jnp.float32)
    m = jnp.asarray(m, jnp.float32)
    c = jnp.asarray(c, jnp.float32)
    s_half = jnp.sqrt(jnp.float32(0.5)) / sigma
    log_k = jnp.log((1.0 - c) * m * sigma * _SQRT_2PI / c)
    return jnp.stack([s_half, log_k]).astype(jnp.float32)


# ----------------------------------------------------------------------------
# Slice-level EM step (length-S vectors -> plain-JAX glue).  Boolean fancy
# indexing of the PyTorch code is reproduced with masked reductions.
# ----------------------------------------------------------------------------
def _normal_pdf(x, mu, sig):
    return jnp.exp(-0.5 * ((x - mu) / sig) ** 2) / (sig * _SQRT_2PI)


def _slice_outlier_update_masked(x, p, c, mask):
    mf = mask.astype(jnp.float32)
    n_sel = jnp.sum(mf)
    sum_in = jnp.sum(x * p * mf)
    sum_out = jnp.sum(x * (1.0 - p) * mf)
    N_in = jnp.sum(p * mf)
    N_out = n_sel - N_in
    x_min = jnp.min(jnp.where(mask, x, jnp.inf))
    x_max = jnp.max(jnp.where(mask, x, -jnp.inf))
    mu_in = jnp.where(N_in > 0, sum_in / jnp.where(N_in > 0, N_in, 1.0), x_min)
    mu_out = jnp.where(N_out > 0, sum_out / jnp.where(N_out > 0, N_out, 1.0),
                       (x_max + mu_in) / 2.0)
    sum2_in = jnp.sum((x - mu_in) ** 2 * p * mf)
    sum2_out = jnp.sum((x - mu_out) ** 2 * p * mf)  # (uses p, matching the reference code)
    sigma_in = jnp.where(
        (sum2_in > 0) & (N_in > 0),
        jnp.sqrt(sum2_in / jnp.where(N_in > 0, N_in, 1.0)),
        jnp.float32(0.025),
    )
    sigma_in = jnp.maximum(sigma_in, jnp.float32(1e-4))
    sigma_out = jnp.where(
        (sum2_out > 0) & (N_out > 0),
        jnp.sqrt(sum2_out / jnp.where(N_out > 0, N_out, 1.0)),
        (mu_out - mu_in) ** 2 / 4.0,
    )
    sigma_out = jnp.maximum(sigma_out, jnp.float32(1e-4))
    reset = (N_in <= 0) | (mu_out <= mu_in)

    g_in = _normal_pdf(x, mu_in, sigma_in)
    g_out = _normal_pdf(x, mu_out, sigma_out)
    p_new = c * g_in / (c * g_in + (1.0 - c) * g_out)
    mask_p = p_new > 0
    p_new = jnp.where(mask_p, p_new, 1.0)
    p_new = jnp.where((x > mu_out) & (~mask_p), 0.0, p_new)
    p_new = jnp.where(reset, jnp.ones_like(p_new), p_new)

    p_out = jnp.where(mask, p_new, p)  # write back only to selected slices
    c_new = jnp.sum(p_new * mf) / jnp.where(n_sel > 0, n_sel, 1.0)
    return c_new, p_out


# ----------------------------------------------------------------------------
# EM.forward
# ----------------------------------------------------------------------------
def em_forward(err, slices_mask, weight=None, scale=None, *, max_intensity, min_intensity,
               c_voxel=0.9, c_slice=0.9, n_iter=3):
    S = err.shape[0]
    V = math.prod(err.shape[1:])
    err2d = err.reshape(S, V).astype(jnp.float32)
    w2d = (jnp.ones_like(err2d) if weight is None
           else weight.reshape(S, V).astype(jnp.float32))
    sm2d = slices_mask.reshape(S, V).astype(jnp.float32)

    tv = _choose_tile(S, V)
    Vp = _round_up(V, NCORES * tv)
    pad = Vp - V
    if pad:
        err2d = jnp.pad(err2d, ((0, 0), (0, pad)))
        w2d = jnp.pad(w2d, ((0, 0), (0, pad)))    # weight=0 -> low=high=0
        sm2d = jnp.pad(sm2d, ((0, 0), (0, pad)))  # mask=0

    # ---- fused prep (1-byte mask code) + all iteration-invariant stats -------
    code2d, st0 = _call_prep_init(err2d, w2d, sm2d, tv)
    denom = jnp.sum(st0[:, :, 2], axis=0)        # per-slice |mask_voxel_high|
    smask_sum = jnp.sum(st0[:, :, 3], axis=0)    # per-slice |slices_mask|

    # sigma_voxel = err[mask_voxel_high].std() (unbiased); m = 1/(2*(max-min))
    n_h = jnp.sum(st0[:, :, 2])
    mean_h = jnp.sum(st0[:, :, 0]) / jnp.maximum(n_h, 1.0)
    var_h = (jnp.sum(st0[:, :, 1]) - n_h * mean_h ** 2) / jnp.maximum(n_h - 1.0, 1.0)
    sigma_v = jnp.sqrt(jnp.maximum(var_h, 0.0))
    m = jnp.float32(1.0 / (2.0 * (max_intensity - min_intensity)))
    c_v = jnp.float32(c_voxel)

    # Iteration-invariant: |high & slices_mask| and max/min of err on that set.
    n_eff = jnp.sum(st0[:, :, 4])
    emax = jnp.max(st0[:, :, 5])
    emin = jnp.min(st0[:, :, 6])
    rng = emax - emin
    safe_n = jnp.maximum(n_eff, 1.0)

    # ---- voxel-level EM iterations (2 global scalars per pass) ---------------
    for _ in range(n_iter):
        sigma_old = sigma_v
        params = _pack_params(sigma_v, m, c_v)
        st = _call_iter_stats(params, err2d, code2d, tv)   # (NCORES, 1, 8)
        sum_p = jnp.sum(st[:, 0, 0])
        sum_e2 = jnp.sum(st[:, 0, 1]) * (2.0 * sigma_old * sigma_old)  # z^2 -> err^2

        c_v = jnp.where(n_eff > 0, sum_p / safe_n, jnp.float32(c_voxel))
        c_v = jnp.where(c_v < 0.1, jnp.float32(c_voxel), c_v)
        sigma_v = jnp.maximum(jnp.sqrt(sum_e2 / safe_n / c_v), jnp.float32(1e-4))
        m = jnp.where(jnp.isfinite(rng) & (rng > 0), 1.0 / rng, m)  # guard degenerate case

    # ---- finalize: p_voxel + per-slice potential -----------------------------
    params = _pack_params(sigma_v, m, c_v)
    p2d, stf = _call_finalize(params, err2d, code2d, tv)
    p_voxel = p2d[:, :V].reshape(err.shape)
    pot_num = jnp.sum(stf[:, :, 0], axis=0)          # per-slice sum((1-p)^2*high)
    safe_den = jnp.where(denom > 0, denom, 1.0)
    potential = jnp.where(denom > 0, jnp.sqrt(pot_num / safe_den), 0.0)

    # ---- slice-level masks ----------------------------------------------------
    mask_slice = denom > 0
    med = jnp.sort(smask_sum)[(S - 1) // 2]          # torch.median -> lower median
    mask_slice = mask_slice & (smask_sum > med * 0.1)
    if scale is not None:
        mask_slice = mask_slice & (scale > 0.2) & (scale < 5)
    p_slice = mask_slice.astype(jnp.float32)
    all_excluded = jnp.sum(p_slice) == 0
    p_slice = jnp.where(all_excluded, jnp.ones_like(p_slice), p_slice)
    mask_slice = jnp.where(all_excluded, jnp.ones_like(mask_slice), mask_slice)

    # ---- slice-level EM iterations (length-S glue, plain JAX) ----------------
    c_s = jnp.float32(c_slice)
    for _ in range(n_iter):
        c_s, p_slice = _slice_outlier_update_masked(potential, p_slice, c_s, mask_slice)

    return p_voxel, p_slice
    # TODO(synk): logging warnings and cross-call caching of sigma_voxel/p_slice
    # from the stateful nn.Module are not reproduced (single forward semantics).


# ----------------------------------------------------------------------------
if __name__ == "__main__":
    key = jax.random.PRNGKey(0)
    S, C, H, W = 8, 1, 16, 16
    k1, k2, k3, k4 = jax.random.split(key, 4)

    err = 0.1 * jax.random.normal(k1, (S, C, H, W), jnp.float32)
    u = jax.random.uniform(k2, (S, C, H, W))
    weight = jnp.where(u < 0.7, 1.0, jnp.where(u < 0.9, 0.5, 0.0)).astype(jnp.float32)
    slices_mask = jax.random.uniform(k3, (S, C, H, W)) < 0.9
    scale = jax.random.uniform(k4, (S,), minval=0.5, maxval=2.0)

    p_voxel, p_slice = em_forward(
        err, slices_mask, weight, scale, max_intensity=1.0, min_intensity=0.0,
        c_voxel=0.9, c_slice=0.9, n_iter=3,
    )
    jax.block_until_ready((p_voxel, p_slice))

    assert p_voxel.shape == (S, C, H, W)
    assert p_slice.shape == (S,)
    assert bool(jnp.all(jnp.isfinite(p_voxel)))
    assert bool(jnp.all(jnp.isfinite(p_slice)))
    assert bool(jnp.all((p_voxel >= 0) & (p_voxel <= 1.0 + 1e-6)))
    print("KERNEL_OK")
</pallas_src>

<mosaic_0001>
module attributes {stable_mosaic.version = 11 : i64} {
  func.func @_prep_init_kernel(%arg0: i32, %arg1: i32, %arg2: memref<8x128xf32, #tpu.memory_space<vmem>>, %arg3: memref<8x128xf32, #tpu.memory_space<vmem>>, %arg4: memref<8x128xf32, #tpu.memory_space<vmem>>, %arg5: memref<8x128xi8, #tpu.memory_space<vmem>>, %arg6: memref<1x8x8xf32, #tpu.memory_space<vmem>>, %arg7: memref<8x8xf32, #tpu.memory_space<vmem>>) attributes {dimension_semantics = [#tpu.dimension_semantics<parallel>, #tpu.dimension_semantics<arbitrary>], iteration_bounds = array<i64: 2, 1>, scalar_prefetch = 0 : i64, scratch_operands = 1 : i64, tpu.core_type = #tpu.core_type<tc>, window_params = [{transform_indices = @transform_0, window_bounds = array<i64: 8, 128>}, {transform_indices = @transform_1, window_bounds = array<i64: 8, 128>}, {transform_indices = @transform_2, window_bounds = array<i64: 8, 128>}, {transform_indices = @transform_3, window_bounds = array<i64: 8, 128>}, {transform_indices = @transform_4, window_bounds = array<i64: 1, 8, 8>}]} {
    %c0_i32 = arith.constant 0 : i32
    %0 = arith.cmpi eq, %arg1, %c0_i32 : i32
    %1 = arith.extui %0 : i1 to i32
    %c0_i32_0 = arith.constant 0 : i32
    %2 = arith.cmpi ne, %1, %c0_i32_0 : i32
    scf.if %2 {
      %cst_43 = arith.constant 0.000000e+00 : f32
      %75 = vector.broadcast %cst_43 : f32 to vector<8x8xf32>
      %c0_44 = arith.constant 0 : index
      %c0_45 = arith.constant 0 : index
      %76 = vector.load %arg7[%c0_44, %c0_45] : memref<8x8xf32, #tpu.memory_space<vmem>>, vector<8x8xf32>
      tpu.vector_store %arg7[%c0_44, %c0_45], %75 {strides = array<i32>} : memref<8x8xf32, #tpu.memory_space<vmem>>, vector<8x8xf32>,
      %cst_46 = arith.constant 0xFF800000 : f32
      %77 = vector.broadcast %cst_46 : f32 to vector<8x1xf32>
      %c0_47 = arith.constant 0 : index
      %c5_48 = arith.constant 5 : index
      %78 = vector.load %arg7[%c0_47, %c5_48] : memref<8x8xf32, #tpu.memory_space<vmem>>, vector<8x1xf32>
      tpu.vector_store %arg7[%c0_47, %c5_48], %77 {strides = array<i32>} : memref<8x8xf32, #tpu.memory_space<vmem>>, vector<8x1xf32>,
      %cst_49 = arith.constant 0x7F800000 : f32
      %79 = vector.broadcast %cst_49 : f32 to vector<8x1xf32>
      %c0_50 = arith.constant 0 : index
      %c6_51 = arith.constant 6 : index
      %80 = vector.load %arg7[%c0_50, %c6_51] : memref<8x8xf32, #tpu.memory_space<vmem>>, vector<8x1xf32>
      tpu.vector_store %arg7[%c0_50, %c6_51], %79 {strides = array<i32>} : memref<8x8xf32, #tpu.memory_space<vmem>>, vector<8x1xf32>,
    } else {
    }
    %c0 = arith.constant 0 : index
    %c0_1 = arith.constant 0 : index
    %3 = vector.load %arg2[%c0, %c0_1] : memref<8x128xf32, #tpu.memory_space<vmem>>, vector<8x128xf32>
    %c0_2 = arith.constant 0 : index
    %c0_3 = arith.constant 0 : index
    %4 = vector.load %arg3[%c0_2, %c0_3] : memref<8x128xf32, #tpu.memory_space<vmem>>, vector<8x128xf32>
    %c0_4 = arith.constant 0 : index
    %c0_5 = arith.constant 0 : index
    %5 = vector.load %arg4[%c0_4, %c0_5] : memref<8x128xf32, #tpu.memory_space<vmem>>, vector<8x128xf32>
    %cst = arith.constant 0.000000e+00 : f32
    %6 = vector.broadcast %cst : f32 to vector<8x128xf32>
    %7 = arith.cmpf ogt, %4, %6 : vector<8x128xf32>
    %cst_6 = arith.constant 9.900000e-01 : f32
    %8 = vector.broadcast %cst_6 : f32 to vector<8x128xf32>
    %9 = arith.cmpf ogt, %4, %8 : vector<8x128xf32>
    %cst_7 = arith.constant 5.000000e-01 : f32
    %10 = vector.broadcast %cst_7 : f32 to vector<8x128xf32>
    %11 = arith.cmpf ogt, %5, %10 : vector<8x128xf32>
    %12 = arith.extui %7 : vector<8x128xi1> to vector<8x128xi32>
    %13 = arith.extui %9 : vector<8x128xi1> to vector<8x128xi32>
    %c2_i32 = arith.constant 2 : i32
    %14 = vector.broadcast %c2_i32 : i32 to vector<8x128xi32>
    %15 = arith.muli %14, %13 : vector<8x128xi32>
    %16 = arith.addi %12, %15 : vector<8x128xi32>
    %17 = arith.extui %11 : vector<8x128xi1> to vector<8x128xi32>
    %c4_i32 = arith.constant 4 : i32
    %18 = vector.broadcast %c4_i32 : i32 to vector<8x128xi32>
    %19 = arith.muli %18, %17 : vector<8x128xi32>
    %20 = arith.addi %16, %19 : vector<8x128xi32>
    %21 = arith.trunci %20 : vector<8x128xi32> to vector<8x128xi8>
    %c0_8 = arith.constant 0 : index
    %c0_9 = arith.constant 0 : index
    %22 = vector.load %arg5[%c0_8, %c0_9] : memref<8x128xi8, #tpu.memory_space<vmem>>, vector<8x128xi8>
    tpu.vector_store %arg5[%c0_8, %c0_9], %21 {strides = array<i32>} : memref<8x128xi8, #tpu.memory_space<vmem>>, vector<8x128xi8>,
    %23 = arith.extui %9 : vector<8x128xi1> to vector<8x128xi32>
    %24 = arith.sitofp %23 : vector<8x128xi32> to vector<8x128xf32>
    %25 = arith.andi %9, %11 : vector<8x128xi1>
    %c0_10 = arith.constant 0 : index
    %c0_11 = arith.constant 0 : index
    %26 = vector.load %arg7[%c0_10, %c0_11] : memref<8x8xf32, #tpu.memory_space<vmem>>, vector<8x1xf32>
    %27 = arith.mulf %3, %24 : vector<8x128xf32>
    %cst_12 = arith.constant dense<0.000000e+00> : vector<8xf32>
    %28 = vector.multi_reduction <add>, %27, %cst_12 [1] : vector<8x128xf32> to vector<8xf32>
    %29 = vector.shape_cast %28 : vector<8xf32> to vector<8x1xf32>
    %30 = arith.addf %26, %29 : vector<8x1xf32>
    %c0_13 = arith.constant 0 : index
    %c0_14 = arith.constant 0 : index
    %31 = vector.load %arg7[%c0_13, %c0_14] : memref<8x8xf32, #tpu.memory_space<vmem>>, vector<8x1xf32>
    tpu.vector_store %arg7[%c0_13, %c0_14], %30 {strides = array<i32>} : memref<8x8xf32, #tpu.memory_space<vmem>>, vector<8x1xf32>,
    %c0_15 = arith.constant 0 : index
    %c1 = arith.constant 1 : index
    %32 = vector.load %arg7[%c0_15, %c1] : memref<8x8xf32, #tpu.memory_space<vmem>>, vector<8x1xf32>
    %33 = arith.mulf %3, %3 : vector<8x128xf32>
    %34 = arith.mulf %33, %24 : vector<8x128xf32>
    %cst_16 = arith.constant dense<0.000000e+00> : vector<8xf32>
    %35 = vector.multi_reduction <add>, %34, %cst_16 [1] : vector<8x128xf32> to vector<8xf32>
    %36 = vector.shape_cast %35 : vector<8xf32> to vector<8x1xf32>
    %37 = arith.addf %32, %36 : vector<8x1xf32>
    %c0_17 = arith.constant 0 : index
    %c1_18 = arith.constant 1 : index
    %38 = vector.load %arg7[%c0_17, %c1_18] : memref<8x8xf32, #tpu.memory_space<vmem>>, vector<8x1xf32>
    tpu.vector_store %arg7[%c0_17, %c1_18], %37 {strides = array<i32>} : memref<8x8xf32, #tpu.memory_space<vmem>>, vector<8x1xf32>,
    %c0_19 = arith.constant 0 : index
    %c2 = arith.constant 2 : index
    %39 = vector.load %arg7[%c0_19, %c2] : memref<8x8xf32, #tpu.memory_space<vmem>>, vector<8x1xf32>
    %cst_20 = arith.constant dense<0.000000e+00> : vector<8xf32>
    %40 = vector.multi_reduction <add>, %24, %cst_20 [1] : vector<8x128xf32> to vector<8xf32>
    %41 = vector.shape_cast %40 : vector<8xf32> to vector<8x1xf32>
    %42 = arith.addf %39, %41 : vector<8x1xf32>
    %c0_21 = arith.constant 0 : index
    %c2_22 = arith.constant 2 : index
    %43 = vector.load %arg7[%c0_21, %c2_22] : memref<8x8xf32, #tpu.memory_space<vmem>>, vector<8x1xf32>
    tpu.vector_store %arg7[%c0_21, %c2_22], %42 {strides = array<i32>} : memref<8x8xf32, #tpu.memory_space<vmem>>, vector<8x1xf32>,
    %c0_23 = arith.constant 0 : index
    %c3 = arith.constant 3 : index
    %44 = vector.load %arg7[%c0_23, %c3] : memref<8x8xf32, #tpu.memory_space<vmem>>, vector<8x1xf32>
    %45 = arith.extui %11 : vector<8x128xi1> to vector<8x128xi32>
    %46 = arith.sitofp %45 : vector<8x128xi32> to vector<8x128xf32>
    %cst_24 = arith.constant dense<0.000000e+00> : vector<8xf32>
    %47 = vector.multi_reduction <add>, %46, %cst_24 [1] : vector<8x128xf32> to vector<8xf32>
    %48 = vector.shape_cast %47 : vector<8xf32> to vector<8x1xf32>
    %49 = arith.addf %44, %48 : vector<8x1xf32>
    %c0_25 = arith.constant 0 : index
    %c3_26 = arith.constant 3 : index
    %50 = vector.load %arg7[%c0_25, %c3_26] : memref<8x8xf32, #tpu.memory_space<vmem>>, vector<8x1xf32>
    tpu.vector_store %arg7[%c0_25, %c3_26], %49 {strides = array<i32>} : memref<8x8xf32, #tpu.memory_space<vmem>>, vector<8x1xf32>,
    %c0_27 = arith.constant 0 : index
    %c4 = arith.constant 4 : index
    %51 = vector.load %arg7[%c0_27, %c4] : memref<8x8xf32, #tpu.memory_space<vmem>>, vector<8x1xf32>
    %52 = arith.extui %25 : vector<8x128xi1> to vector<8x128xi32>
    %53 = arith.sitofp %52 : vector<8x128xi32> to vector<8x128xf32>
    %cst_28 = arith.constant dense<0.000000e+00> : vector<8xf32>
    %54 = vector.multi_reduction <add>, %53, %cst_28 [1] : vector<8x128xf32> to vector<8xf32>
    %55 = vector.shape_cast %54 : vector<8xf32> to vector<8x1xf32>
    %56 = arith.addf %51, %55 : vector<8x1xf32>
    %c0_29 = arith.constant 0 : index
    %c4_30 = arith.constant 4 : index
    %57 = vector.load %arg7[%c0_29, %c4_30] : memref<8x8xf32, #tpu.memory_space<vmem>>, vector<8x1xf32>
    tpu.vector_store %arg7[%c0_29, %c4_30], %56 {strides = array<i32>} : memref<8x8xf32, #tpu.memory_space<vmem>>, vector<8x1xf32>,
    %c0_31 = arith.constant 0 : index
    %c5 = arith.constant 5 : index
    %58 = vector.load %arg7[%c0_31, %c5] : memref<8x8xf32, #tpu.memory_space<vmem>>, vector<8x1xf32>
    %cst_32 = arith.constant 0xFF800000 : f32
    %59 = vector.broadcast %cst_32 : f32 to vector<8x128xf32>
    %60 = arith.select %25, %3, %59 : vector<8x128xi1>, vector<8x128xf32>
    %cst_33 = arith.constant dense<0xFF800000> : vector<8xf32>
    %61 = vector.multi_reduction <maximumf>, %60, %cst_33 [1] : vector<8x128xf32> to vector<8xf32>
    %62 = vector.shape_cast %61 : vector<8xf32> to vector<8x1xf32>
    %63 = arith.maximumf %58, %62 : vector<8x1xf32>
    %c0_34 = arith.constant 0 : index
    %c5_35 = arith.constant 5 : index
    %64 = vector.load %arg7[%c0_34, %c5_35] : memref<8x8xf32, #tpu.memory_space<vmem>>, vector<8x1xf32>
    tpu.vector_store %arg7[%c0_34, %c5_35], %63 {strides = array<i32>} : memref<8x8xf32, #tpu.memory_space<vmem>>, vector<8x1xf32>,
    %c0_36 = arith.constant 0 : index
    %c6 = arith.constant 6 : index
    %65 = vector.load %arg7[%c0_36, %c6] : memref<8x8xf32, #tpu.memory_space<vmem>>, vector<8x1xf32>
    %cst_37 = arith.constant 0x7F800000 : f32
    %66 = vector.broadcast %cst_37 : f32 to vector<8x128xf32>
    %67 = arith.select %25, %3, %66 : vector<8x128xi1>, vector<8x128xf32>
    %cst_38 = arith.constant dense<0x7F800000> : vector<8xf32>
    %68 = vector.multi_reduction <minimumf>, %67, %cst_38 [1] : vector<8x128xf32> to vector<8xf32>
    %69 = vector.shape_cast %68 : vector<8xf32> to vector<8x1xf32>
    %70 = arith.minimumf %65, %69 : vector<8x1xf32>
    %c0_39 = arith.constant 0 : index
    %c6_40 = arith.constant 6 : index
    %71 = vector.load %arg7[%c0_39, %c6_40] : memref<8x8xf32, #tpu.memory_space<vmem>>, vector<8x1xf32>
    tpu.vector_store %arg7[%c0_39, %c6_40], %70 {strides = array<i32>} : memref<8x8xf32, #tpu.memory_space<vmem>>, vector<8x1xf32>,
    %c0_i32_41 = arith.constant 0 : i32
    %72 = arith.cmpi eq, %arg1, %c0_i32_41 : i32
    %73 = arith.extui %72 : i1 to i32
    %c0_i32_42 = arith.constant 0 : i32
    %74 = arith.cmpi ne, %73, %c0_i32_42 : i32
    scf.if %74 {
      %c0_43 = arith.constant 0 : index
      %c0_44 = arith.constant 0 : index
      %75 = vector.load %arg7[%c0_43, %c0_44] : memref<8x8xf32, #tpu.memory_space<vmem>>, vector<8x8xf32>
      %76 = vector.shape_cast %75 : vector<8x8xf32> to vector<1x8x8xf32>
      %c0_45 = arith.constant 0 : index
      %c0_46 = arith.constant 0 : index
      %c0_47 = arith.constant 0 : index
      %77 = vector.load %arg6[%c0_45, %c0_46, %c0_47] : memref<1x8x8xf32, #tpu.memory_space<vmem>>, vector<1x8x8xf32>
      tpu.vector_store %arg6[%c0_45, %c0_46, %c0_47], %76 {strides = array<i32>} : memref<1x8x8xf32, #tpu.memory_space<vmem>>, vector<1x8x8xf32>,
    } else {
    }
    return
  }
  func.func @transform_0(%arg0: i32, %arg1: i32) -> (i32, i32) {
    %c1_i32 = arith.constant 1 : i32
    %0 = arith.muli %arg0, %c1_i32 : i32
    %1 = arith.addi %0, %arg1 : i32
    %c0_i32 = arith.constant 0 : i32
    %c0_i32_0 = arith.constant 0 : i32
    return %c0_i32, %1 : i32, i32
  }
  func.func @transform_1(%arg0: i32, %arg1: i32) -> (i32, i32) {
    %c1_i32 = arith.constant 1 : i32
    %0 = arith.muli %arg0, %c1_i32 : i32
    %1 = arith.addi %0, %arg1 : i32
    %c0_i32 = arith.constant 0 : i32
    %c0_i32_0 = arith.constant 0 : i32
    return %c0_i32, %1 : i32, i32
  }
  func.func @transform_2(%arg0: i32, %arg1: i32) -> (i32, i32) {
    %c1_i32 = arith.constant 1 : i32
    %0 = arith.muli %arg0, %c1_i32 : i32
    %1 = arith.addi %0, %arg1 : i32
    %c0_i32 = arith.constant 0 : i32
    %c0_i32_0 = arith.constant 0 : i32
    return %c0_i32, %1 : i32, i32
  }
  func.func @transform_3(%arg0: i32, %arg1: i32) -> (i32, i32) {
    %c1_i32 = arith.constant 1 : i32
    %0 = arith.muli %arg0, %c1_i32 : i32
    %1 = arith.addi %0, %arg1 : i32
    %c0_i32 = arith.constant 0 : i32
    %c0_i32_0 = arith.constant 0 : i32
    return %c0_i32, %1 : i32, i32
  }
  func.func @transform_4(%arg0: i32, %arg1: i32) -> (i32, i32, i32) {
    %c0_i32 = arith.constant 0 : i32
    %c0_i32_0 = arith.constant 0 : i32
    %c0_i32_1 = arith.constant 0 : i32
    return %arg0, %c0_i32, %c0_i32_0 : i32, i32, i32
  }
}

</mosaic_0001>

<llo_original>
// kernel: tpu_custom_call.1
$region0: #{tpu_custom_call.1}
  #allocation0 [shape = 'u32[]', space=smem, size = 0x4, offset = 0x4, fixed_abs, tag = 'smem constant byte address 0x4 - core index']
  #allocation1 [shape = 'u32[144,128]{1,0:T(1,128)}', space=vmem, size = 0x12000, scoped, tag = 'internal scratch']
  #allocation2 [shape = 'f32[8,8]{1,0:T(8,128)}', space=vmem, size = 0x1000, scoped, tag = 'scratch operand']
  %s0 = inlined_call_operand.hbm [shape: f32[8,256], index: 0, kind: input, shape index: {}]
  %s1 = inlined_call_operand.hbm [shape: f32[8,256], index: 1, kind: input, shape index: {}]
  %s2 = inlined_call_operand.hbm [shape: f32[8,256], index: 2, kind: input, shape index: {}]
  %s3 = inlined_call_operand.hbm [shape: s8[8,256], index: 3, kind: output, shape index: {0}]
  %s4 = inlined_call_operand.hbm [shape: f32[2,8,8], index: 4, kind: output, shape index: {1}]
  %5 = xla_tuple %s3, %s4
  %s6 = sld [smem:[#allocation0]]
  $region73: #{tpu_custom_call.1} parent=0
    _
  %s8 = ssub.s32 1, %s6
  %s9 = scalar_select 0, %s8, %s6
  $region1: #{tpu_custom_call.1} parent=0
    #allocation3 [shape = 'u8[8192]{0}', space=vmem, size = 0x2000, scoped, tag = 'input window, operand 0']
    #allocation4 [shape = 's32[2]{0}', space=sflag, size = 0x8, scoped, tag = 'scoped memory for tpu_custom_call.1']
    #allocation5 [shape = 's32[2]{0}', space=sflag, size = 0x8, scoped, tag = 'scoped memory for tpu_custom_call.1']
    #allocation6 [shape = 'u8[8192]{0}', space=vmem, size = 0x2000, scoped, tag = 'input window, operand 1']
    #allocation7 [shape = 's32[2]{0}', space=sflag, size = 0x8, scoped, tag = 'scoped memory for tpu_custom_call.1']
    #allocation8 [shape = 'u8[8192]{0}', space=vmem, size = 0x2000, scoped, tag = 'input window, operand 2']
    #allocation9 [shape = 'u8[2048]{0}', space=vmem, size = 0x800, scoped, tag = 'output window, operand 0']
    #allocation10 [shape = 'u8[8192]{0}', space=vmem, size = 0x2000, scoped, tag = 'output window, operand 1']
    #allocation11 [shape = 's32[2]{0}', space=sflag, size = 0x8, scoped, tag = 'scoped memory for tpu_custom_call.1']
    %10 = vsyncpa [#allocation4], 0
    %s11 = scalar_lea.sflag [#allocation4], 1
    %12 = vsyncpa %s11, 0
    %13 = vsyncpa [#allocation7], 0
    %s14 = scalar_lea.sflag [#allocation7], 1
    %15 = vsyncpa %s14, 0
    %16 = vsyncpa [#allocation5], 0
    %s17 = scalar_lea.sflag [#allocation5], 1
    %18 = vsyncpa %s17, 0
    %19 = vsyncpa [#allocation11], 0
    %s20 = scalar_lea.sflag [#allocation11], 1
    %21 = vsyncpa %s20, 0
    loop: start=0, step=1, limit=4
    $region2: #{tpu_custom_call.1} parent=1 // loop_pre_header
      _
    $region3: #{tpu_custom_call.1} parent=1 // loop_header
      %s23 = sphi 0, %s27
      %p24 = scmp.ge.s32.totalorder %s23, 4
      %s30 = sphi 0, %s42
      %s31 = sphi 0, %s38
      %s32 = sphi 0, %s30
      %s33 = sphi 0, %s31
      %s34 = sphi 0, %s32
      %s35 = sphi 0, %s33
      %s47 = sphi 0, %s49
      %s50 = sphi 0, %s47
      %s51 = sphi 0, %s50
      %s67 = sphi 0, %s51
      %s75 = sphi 0, %s77
      %s78 = sphi 0, %s75
      %s79 = sphi 0, %s78
      %s95 = sphi 0, %s79
      %s103 = sphi 0, %s105
      %s106 = sphi 0, %s103
      %s107 = sphi 0, %s106
      %s123 = sphi 0, %s107
      %s131 = sphi 0, %s133
      %s134 = sphi 0, %s131
      %s135 = sphi 0, %s134
      %s151 = sphi 0, %s135
      %s157 = sphi 0, %s159
      %s160 = sphi 0, %s157
      %s161 = sphi 0, %s160
      %s177 = sphi 0, %s161
    $region4: #{tpu_custom_call.1} parent=1 // loop_header_branch
      %26 = sbr.rel (%p24) target = $region8
    $region5: #{tpu_custom_call.1} parent=1 // loop_body
      %s28 = ssub.s32 %s23, 1
      %s29 = ssub.s32 %s23, 2
      %s36 = sadd.s32 1, %s31
      %p37 = scmp.ge.s32.totalorder %s36, 1
      %s38 = scalar_select %p37, 0, %s36
      %s39 = sadd.s32 1, %s30
      %s40 = scalar_select %p37, %s39, %s30
      %p41 = scmp.ge.s32.totalorder %s40, 2
      %s42 = scalar_select %p41, 0, %s40
      %s43 = sadd.s32 %s30, %s31
      %s44 = sadd.s32 %s42, %s38
      %s45 = ssub.s32 %s43, %s44
      %p46 = scmp.eq.s32.totalorder %s45, 0
      %s48 = sadd.s32 %s47, 1
      %s49 = scalar_select %p46, %s47, %s48
      %p52 = pneg %p46
      %p53 = scmp.eq.s32.totalorder %s23, 1
      %p54 = por %p52, %p53
      %p55 = scmp.ne.s32.totalorder %s47, %s50
      %p56 = scmp.eq.s32.totalorder %s23, 0
      %p57 = por %p55, %p56
      %p58 = scmp.ne.s32.totalorder %s47, %s50
      %p59 = scmp.eq.s32.totalorder %s28, 1
      %p60 = por %p58, %p59
      %p61 = scmp.ne.s32.totalorder %s50, %s51
      %p62 = scmp.eq.s32.totalorder %s28, 0
      %p63 = por %p61, %p62
      %p64 = scmp.ne.s32.totalorder %s50, %s51
      %p65 = scmp.eq.s32.totalorder %s29, 1
      %p66 = por %p64, %p65
      %p68 = scmp.ne.s32.totalorder %s51, %s67
      %p69 = scmp.eq.s32.totalorder %s29, 0
      %p70 = por %p68, %p69
      %s71 = sadd.s32 %s30, %s31
      %s72 = sadd.s32 %s42, %s38
      %s73 = ssub.s32 %s71, %s72
      %p74 = scmp.eq.s32.totalorder %s73, 0
      %s76 = sadd.s32 %s75, 1
      %s77 = scalar_select %p74, %s75, %s76
      %p80 = pneg %p74
      %p81 = scmp.eq.s32.totalorder %s23, 1
      %p82 = por %p80, %p81
      %p83 = scmp.ne.s32.totalorder %s75, %s78
      %p84 = scmp.eq.s32.totalorder %s23, 0
      %p85 = por %p83, %p84
      %p86 = scmp.ne.s32.totalorder %s75, %s78
      %p87 = scmp.eq.s32.totalorder %s28, 1
      %p88 = por %p86, %p87
      %p89 = scmp.ne.s32.totalorder %s78, %s79
      %p90 = scmp.eq.s32.totalorder %s28, 0
      %p91 = por %p89, %p90
      %p92 = scmp.ne.s32.totalorder %s78, %s79
      %p93 = scmp.eq.s32.totalorder %s29, 1
      %p94 = por %p92, %p93
      %p96 = scmp.ne.s32.totalorder %s79, %s95
      %p97 = scmp.eq.s32.totalorder %s29, 0
      %p98 = por %p96, %p97
      %s99 = sadd.s32 %s30, %s31
      %s100 = sadd.s32 %s42, %s38
      %s101 = ssub.s32 %s99, %s100
      %p102 = scmp.eq.s32.totalorder %s101, 0
      %s104 = sadd.s32 %s103, 1
      %s105 = scalar_select %p102, %s103, %s104
      %p108 = pneg %p102
      %p109 = scmp.eq.s32.totalorder %s23, 1
      %p110 = por %p108, %p109
      %p111 = scmp.ne.s32.totalorder %s103, %s106
      %p112 = scmp.eq.s32.totalorder %s23, 0
      %p113 = por %p111, %p112
      %p114 = scmp.ne.s32.totalorder %s103, %s106
      %p115 = scmp.eq.s32.totalorder %s28, 1
      %p116 = por %p114, %p115
      %p117 = scmp.ne.s32.totalorder %s106, %s107
      %p118 = scmp.eq.s32.totalorder %s28, 0
      %p119 = por %p117, %p118
      %p120 = scmp.ne.s32.totalorder %s106, %s107
      %p121 = scmp.eq.s32.totalorder %s29, 1
      %p122 = por %p120, %p121
      %p124 = scmp.ne.s32.totalorder %s107, %s123
      %p125 = scmp.eq.s32.totalorder %s29, 0
      %p126 = por %p124, %p125
      %s127 = sadd.s32 %s30, %s31
      %s128 = sadd.s32 %s42, %s38
      %s129 = ssub.s32 %s127, %s128
      %p130 = scmp.eq.s32.totalorder %s129, 0
      %s132 = sadd.s32 %s131, 1
      %s133 = scalar_select %p130, %s131, %s132
      %p136 = pneg %p130
      %p137 = scmp.eq.s32.totalorder %s23, 1
      %p138 = por %p136, %p137
      %p139 = scmp.ne.s32.totalorder %s131, %s134
      %p140 = scmp.eq.s32.totalorder %s23, 0
      %p141 = por %p139, %p140
      %p142 = scmp.ne.s32.totalorder %s131, %s134
      %p143 = scmp.eq.s32.totalorder %s28, 1
      %p144 = por %p142, %p143
      %p145 = scmp.ne.s32.totalorder %s134, %s135
      %p146 = scmp.eq.s32.totalorder %s28, 0
      %p147 = por %p145, %p146
      %p148 = scmp.ne.s32.totalorder %s134, %s135
      %p149 = scmp.eq.s32.totalorder %s29, 1
      %p150 = por %p148, %p149
      %p152 = scmp.ne.s32.totalorder %s135, %s151
      %p153 = scmp.eq.s32.totalorder %s29, 0
      %p154 = por %p152, %p153
      %s155 = ssub.s32 %s30, %s42
      %p156 = scmp.eq.s32.totalorder %s155, 0
      %s158 = sadd.s32 %s157, 1
      %s159 = scalar_select %p156, %s157, %s158
      %p162 = pneg %p156
      %p163 = scmp.eq.s32.totalorder %s23, 1
      %p164 = por %p162, %p163
      %p165 = scmp.ne.s32.totalorder %s157, %s160
      %p166 = scmp.eq.s32.totalorder %s23, 0
      %p167 = por %p165, %p166
      %p168 = scmp.ne.s32.totalorder %s157, %s160
      %p169 = scmp.eq.s32.totalorder %s28, 1
      %p170 = por %p168, %p169
      %p171 = scmp.ne.s32.totalorder %s160, %s161
      %p172 = scmp.eq.s32.totalorder %s28, 0
      %p173 = por %p171, %p172
      %p174 = scmp.ne.s32.totalorder %s160, %s161
      %p175 = scmp.eq.s32.totalorder %s29, 1
      %p176 = por %p174, %p175
      %p178 = scmp.ne.s32.totalorder %s161, %s177
      %p179 = scmp.eq.s32.totalorder %s29, 0
      %p180 = por %p178, %p179
      %p181 = scmp.le.s32.totalorder 1, %s23
      %p182 = scmp.lt.s32.totalorder %s23, 3
      %p183 = pnand %p181, %p182
      %p184 = pneg %p183
      // Predicated region
      $region9: #{tpu_custom_call.1} parent=5 // pred_check
        _
      $region10: #{tpu_custom_call.1} parent=5 // pred_check_branch
        %186 = sbr.rel (%p183) target = $region12
      $region11: #{tpu_custom_call.1} parent=5 // pred_region
        %s187 = ssub.s32 %s23, 1
      $region12: #{tpu_custom_call.1} parent=5 // pred_fallthru
        _
      %p188 = scmp.lt.s32.totalorder %s23, 2
      // Predicated region
      $region13: #{tpu_custom_call.1} parent=5 // pred_check
        %p189 = pneg %p188
      $region14: #{tpu_custom_call.1} parent=5 // pred_check_branch
        %191 = sbr.rel (%p189) target = $region16
      $region15: #{tpu_custom_call.1} parent=5 // pred_region
        // Predicated region
        $region17: #{tpu_custom_call.1} parent=15 // pred_check
          %p192 = pneg %p57
        $region18: #{tpu_custom_call.1} parent=15 // pred_check_branch
          %194 = sbr.rel (%p192) target = $region20
        $region19: #{tpu_custom_call.1} parent=15 // pred_region
          %s195 = sand.u32 %s47, 1
          %s196 = scalar_lea.sflag [#allocation4], %s195
          %s197 = sand.u32 %s47, 1
          %s198 = smul.addr %s197, 8
          %s199 = scalar_lea.vmem [#allocation3], %s198
          %s200 = sadd.s32 %s30, %s31
          %s202 = ssub.s32 128, 128
          %203 = vsyncadd %s196, %s202
          %s204 = smul.addr %s200, 128
          %s205 = scalar_lea.hbm %s0, %s204
          %s207 = sshll.u32 %s199, 4
          %s208 = int_to_ptr.vmem [resolvable:$true] %s207
          %210 = dma.hbm_to_vmem [thread:$0]  %s205, 128, %s208, %s196
        $region20: #{tpu_custom_call.1} parent=15 // pred_fallthru
          _
        // Predicated region
        $region21: #{tpu_custom_call.1} parent=15 // pred_check
          %p211 = pneg %p85
        $region22: #{tpu_custom_call.1} parent=15 // pred_check_branch
          %213 = sbr.rel (%p211) target = $region24
        $region23: #{tpu_custom_call.1} parent=15 // pred_region
          %s214 = sand.u32 %s23, 1
          %s215 = scalar_lea.sflag [#allocation7], %s214
          %s216 = sand.u32 %s75, 1
          %s217 = smul.addr %s216, 8
          %s218 = scalar_lea.vmem [#allocation6], %s217
          %s219 = sadd.s32 %s30, %s31
          %s221 = ssub.s32 128, 128
          %222 = vsyncadd %s215, %s221
          %s223 = smul.addr %s219, 128
          %s224 = scalar_lea.hbm %s1, %s223
          %s226 = sshll.u32 %s218, 4
          %s227 = int_to_ptr.vmem [resolvable:$true] %s226
          %229 = dma.hbm_to_vmem [thread:$0]  %s224, 128, %s227, %s215
        $region24: #{tpu_custom_call.1} parent=15 // pred_fallthru
          _
        // Predicated region
        $region25: #{tpu_custom_call.1} parent=15 // pred_check
          %p230 = pneg %p113
        $region26: #{tpu_custom_call.1} parent=15 // pred_check_branch
          %232 = sbr.rel (%p230) target = $region28
        $region27: #{tpu_custom_call.1} parent=15 // pred_region
          %s233 = sand.u32 %s23, 1
          %s234 = scalar_lea.sflag [#allocation7], %s233
          %s235 = sand.u32 %s103, 1
          %s236 = smul.addr %s235, 8
          %s237 = scalar_lea.vmem [#allocation8], %s236
          %s238 = sadd.s32 %s30, %s31
          %s240 = ssub.s32 128, 128
          %241 = vsyncadd %s234, %s240
          %s242 = smul.addr %s238, 128
          %s243 = scalar_lea.hbm %s2, %s242
          %s245 = sshll.u32 %s237, 4
          %s246 = int_to_ptr.vmem [resolvable:$true] %s245
          %248 = dma.hbm_to_vmem [thread:$0]  %s243, 128, %s246, %s234
        $region28: #{tpu_custom_call.1} parent=15 // pred_fallthru
          _
      $region16: #{tpu_custom_call.1} parent=5 // pred_fallthru
        _
      %p249 = scmp.le.s32.totalorder 1, %s23
      %p250 = scmp.lt.s32.totalorder %s23, 3
      %p251 = pnand %p249, %p250
      %p252 = pneg %p251
      // Predicated region
      $region29: #{tpu_custom_call.1} parent=5 // pred_check
        _
      $region30: #{tpu_custom_call.1} parent=5 // pred_check_branch
        %254 = sbr.rel (%p251) target = $region32
      $region31: #{tpu_custom_call.1} parent=5 // pred_region
        %s255 = ssub.s32 %s23, 1
        %s256 = sand.u32 %s50, 1
        %s257 = scalar_lea.sflag [#allocation4], %s256
        %s258 = sand.u32 %s50, 1
        %s259 = smul.addr %s258, 8
        %s260 = scalar_lea.vmem [#allocation3], %s259
        // Predicated region
        $region33: #{tpu_custom_call.1} parent=31 // pred_check
          %p261 = pneg %p63
        $region34: #{tpu_custom_call.1} parent=31 // pred_check_branch
          %263 = sbr.rel (%p261) target = $region36
        $region35: #{tpu_custom_call.1} parent=31 // pred_region
          %264 = dma.done %s257, 128
        $region36: #{tpu_custom_call.1} parent=31 // pred_fallthru
          _
        %s265 = sand.u32 %s28, 1
        %s266 = scalar_lea.sflag [#allocation7], %s265
        %s267 = sand.u32 %s78, 1
        %s268 = smul.addr %s267, 8
        %s269 = scalar_lea.vmem [#allocation6], %s268
        // Predicated region
        $region37: #{tpu_custom_call.1} parent=31 // pred_check
          %p270 = pneg %p91
        $region38: #{tpu_custom_call.1} parent=31 // pred_check_branch
          %272 = sbr.rel (%p270) target = $region40
        $region39: #{tpu_custom_call.1} parent=31 // pred_region
          %273 = dma.done %s266, 128
        $region40: #{tpu_custom_call.1} parent=31 // pred_fallthru
          _
        %s274 = sand.u32 %s28, 1
        %s275 = scalar_lea.sflag [#allocation7], %s274
        %s276 = sand.u32 %s106, 1
        %s277 = smul.addr %s276, 8
        %s278 = scalar_lea.vmem [#allocation8], %s277
        // Predicated region
        $region41: #{tpu_custom_call.1} parent=31 // pred_check
          %p279 = pneg %p119
        $region42: #{tpu_custom_call.1} parent=31 // pred_check_branch
          %281 = sbr.rel (%p279) target = $region44
        $region43: #{tpu_custom_call.1} parent=31 // pred_region
          %282 = dma.done %s275, 128
        $region44: #{tpu_custom_call.1} parent=31 // pred_fallthru
          _
        %s283 = sand.u32 %s50, 1
        %s284 = scalar_lea.sflag [#allocation4], %s283
        %s285 = sand.u32 %s50, 1
        %s286 = smul.addr %s285, 8
        %s287 = scalar_lea.vmem [#allocation3], %s286
        %p288 = pneg %p63
        %p289 = pneg %p60
        %s290 = sand.u32 %s28, 1
        %s291 = scalar_lea.sflag [#allocation7], %s290
        %s292 = sand.u32 %s78, 1
        %s293 = smul.addr %s292, 8
        %s294 = scalar_lea.vmem [#allocation6], %s293
        %p295 = pneg %p91
        %p296 = pneg %p88
        %s297 = sand.u32 %s28, 1
        %s298 = scalar_lea.sflag [#allocation7], %s297
        %s299 = sand.u32 %s106, 1
        %s300 = smul.addr %s299, 8
        %s301 = scalar_lea.vmem [#allocation8], %s300
        %p302 = pneg %p119
        %p303 = pneg %p116
        %p304 = pneg %p147
        %p305 = pneg %p144
        %s306 = sand.u32 %s134, 1
        %s307 = scalar_lea.sflag [#allocation5], %s306
        %s308 = sand.u32 %s134, 1
        %s309 = smul.addr %s308, 2
        %s310 = scalar_lea.vmem [#allocation9], %s309
        %p311 = pneg %p173
        %p312 = pneg %p170
        %s313 = sand.u32 %s160, 1
        %s314 = scalar_lea.sflag [#allocation11], %s313
        %s315 = sand.u32 %s160, 1
        %s316 = smul.addr %s315, 8
        %s317 = scalar_lea.vmem [#allocation10], %s316
        %s318 = sadd.s32 %s32, %s33
        %s319 = sadd.s32 %s32, %s33
        %s320 = sadd.s32 %s32, %s33
        %s321 = sadd.s32 %s32, %s33
        %p322 = scmp.eq.s32.totalorder %s33, 0
        // Predicated region
        $region45: #{tpu_custom_call.1} parent=31 // pred_check
          %p323 = pneg %p322
        $region46: #{tpu_custom_call.1} parent=31 // pred_check_branch
          %325 = sbr.rel (%p323) target = $region48
        $region47: #{tpu_custom_call.1} parent=31 // pred_region
          %vm326 = vcmask 64512
          %327 = vst.msk [vmem:[#allocation2] sm:$0xff] %vm326, 0.0
          %vm328 = vcmask 48168
          %329 = vst.msk [vmem:[#allocation2] sm:$0xff] %vm328, -inf
          %vm330 = vcmask 56368
          %331 = vst.msk [vmem:[#allocation2] sm:$0xff] %vm330, inf
        $region48: #{tpu_custom_call.1} parent=31 // pred_fallthru
          _
        %v332 = vld [vmem:[%s260] sm:$0xff]
        %v333 = vld [vmem:[%s269] sm:$0xff]
        %v334 = vld [vmem:[%s278] sm:$0xff]
        %vm335 = vcmp.gt.f32.partialorder %v333, 0.0
        %vm336 = vcmp.gt.f32.partialorder %v333, 0.99
        %vm337 = vcmp.gt.f32.partialorder %v334, 0.5
        %v338 = vsel %vm335, 1, 0
        %v339 = vsel %vm336, 1, 0
        %v340 = vmul.u32 %v339, 2
        %v341 = vadd.s32 %v338, %v340
        %v342 = vsel %vm337, 1, 0
        %v343 = vmul.u32 %v342, 4
        %v344 = vadd.s32 %v341, %v343
        %v345 = vpack.c.b16 %v344, %v344
        %v346 = vpack.c.b8 %v345, %v345
        %347 = vst [vmem:[%s310] sm:$0x3] %v346
        %v348 = vcvt.s32.f32 %v339
        %vm349 = vmand %vm336, %vm337
        %v350 = vld [vmem:[#allocation2] sm:$0xff]
        %v351 = vmul.f32 %v332, %v348
        %352 = vadd.xlane.f32.xlu0 %v351
        %v353 = vpop.xlane.xlu0 %352
        %v354 = vadd.f32 %v350, %v353
        %vm355 = vcmask 7168
        %356 = vst.msk [vmem:[#allocation2] sm:$0xff] %vm355, %v354
        %v357 = vld [vmem:[#allocation2] sm:$0xff]
        %v358 = vmul.f32 %v332, %v332
        %v359 = vmul.f32 %v358, %v348
        %360 = vadd.xlane.f32.xlu0 %v359
        %v361 = vpop.xlane.xlu0 %360
        %v362 = vadd.f32 %v357, %v361
        %vm363 = vcmask 15368
        %364 = vst.msk [vmem:[#allocation2] sm:$0xff] %vm363, %v362
        %v365 = vld [vmem:[#allocation2] sm:$0xff]
        %366 = vadd.xlane.f32.xlu0 %v348
        %v367 = vpop.xlane.xlu0 %366
        %v368 = vadd.f32 %v365, %v367
        %vm369 = vcmask 23568
        %370 = vst.msk [vmem:[#allocation2] sm:$0xff] %vm369, %v368
        %v371 = vld [vmem:[#allocation2] sm:$0xff]
        %v372 = vcvt.s32.f32 %v342
        %373 = vadd.xlane.f32.xlu0 %v372
        %v374 = vpop.xlane.xlu0 %373
        %v375 = vadd.f32 %v371, %v374
        %vm376 = vcmask 31768
        %377 = vst.msk [vmem:[#allocation2] sm:$0xff] %vm376, %v375
        %v378 = vld [vmem:[#allocation2] sm:$0xff]
        %v379 = vsel %vm349, 1, 0
        %v380 = vcvt.s32.f32 %v379
        %381 = vadd.xlane.f32.xlu0 %v380
        %v382 = vpop.xlane.xlu0 %381
        %v383 = vadd.f32 %v378, %v382
        %vm384 = vcmask 39968
        %385 = vst.msk [vmem:[#allocation2] sm:$0xff] %vm384, %v383
        %v386 = vld [vmem:[#allocation2] sm:$0xff]
        %v387 = vsel %vm349, %v332, -inf
        %388 = vmax.xlane.f32.xlu0 %v387
        %v389 = vpop.xlane.xlu0 %388
        %v390 = vmax.f32 %v386, %v389
        %vm391 = vcmask 48168
        %392 = vst.msk [vmem:[#allocation2] sm:$0xff] %vm391, %v390
        %v393 = vld [vmem:[#allocation2] sm:$0xff]
        %v394 = vsel %vm349, %v332, inf
        %395 = vmin.xlane.f32.xlu0 %v394
        %v396 = vpop.xlane.xlu0 %395
        %v397 = vmin.f32 %v393, %v396
        %vm398 = vcmask 56368
        %399 = vst.msk [vmem:[#allocation2] sm:$0xff] %vm398, %v397
        // Predicated region
        $region49: #{tpu_custom_call.1} parent=31 // pred_check
          %p400 = pneg %p322
        $region50: #{tpu_custom_call.1} parent=31 // pred_check_branch
          %402 = sbr.rel (%p400) target = $region52
        $region51: #{tpu_custom_call.1} parent=31 // pred_region
          %v403 = vld [vmem:[#allocation2] sm:$0xff]
          %vm404 = vcmask 64512
          %405 = vst.msk [vmem:[%s317] sm:$0xff] %vm404, %v403
        $region52: #{tpu_custom_call.1} parent=31 // pred_fallthru
          _
        %s406 = sand.u32 %s134, 1
        %s407 = scalar_lea.sflag [#allocation5], %s406
        %s408 = sand.u32 %s134, 1
        %s409 = smul.addr %s408, 2
        %s410 = scalar_lea.vmem [#allocation9], %s409
        %s411 = sand.u32 %s160, 1
        %s412 = scalar_lea.sflag [#allocation11], %s411
        %s413 = sand.u32 %s160, 1
        %s414 = smul.addr %s413, 8
        %s415 = scalar_lea.vmem [#allocation10], %s414
        // Predicated region
        $region53: #{tpu_custom_call.1} parent=31 // pred_check
          %p416 = pneg %p144
        $region54: #{tpu_custom_call.1} parent=31 // pred_check_branch
          %418 = sbr.rel (%p416) target = $region56
        $region55: #{tpu_custom_call.1} parent=31 // pred_region
          %s419 = sadd.s32 %s32, %s33
          %s421 = ssub.s32 32, 32
          %422 = vsyncadd %s407, %s421
          %s423 = smul.addr %s419, 32
          %s424 = scalar_lea.hbm %s3, %s423
          %s426 = sshll.u32 %s410, 4
          %s427 = int_to_ptr.vmem [resolvable:$true] %s426
          %429 = dma.vmem_to_hbm [thread:$0]  %s427, 32, %s424, %s407
        $region56: #{tpu_custom_call.1} parent=31 // pred_fallthru
          _
        // Predicated region
        $region57: #{tpu_custom_call.1} parent=31 // pred_check
          %p430 = pneg %p170
        $region58: #{tpu_custom_call.1} parent=31 // pred_check_branch
          %432 = sbr.rel (%p430) target = $region60
        $region59: #{tpu_custom_call.1} parent=31 // pred_region
          %s434 = ssub.s32 128, 128
          %435 = vsyncadd %s412, %s434
          %s436 = smul.addr %s32, 128
          %s437 = scalar_lea.hbm %s4, %s436
          %s439 = sshll.u32 %s415, 4
          %s440 = int_to_ptr.vmem [resolvable:$true] %s439
          %442 = dma.vmem_to_hbm [thread:$0]  %s440, 128, %s437, %s412
        $region60: #{tpu_custom_call.1} parent=31 // pred_fallthru
          _
      $region32: #{tpu_custom_call.1} parent=5 // pred_fallthru
        _
      %p443 = scmp.le.s32.totalorder 2, %s23
      // Predicated region
      $region61: #{tpu_custom_call.1} parent=5 // pred_check
        %p444 = pneg %p443
      $region62: #{tpu_custom_call.1} parent=5 // pred_check_branch
        %446 = sbr.rel (%p444) target = $region64
      $region63: #{tpu_custom_call.1} parent=5 // pred_region
        %s447 = ssub.s32 %s23, 2
        // Predicated region
        $region65: #{tpu_custom_call.1} parent=63 // pred_check
          %p448 = pneg %p150
        $region66: #{tpu_custom_call.1} parent=63 // pred_check_branch
          %450 = sbr.rel (%p448) target = $region68
        $region67: #{tpu_custom_call.1} parent=63 // pred_region
          %s451 = sand.u32 %s135, 1
          %s452 = scalar_lea.sflag [#allocation5], %s451
          %s453 = sand.u32 %s135, 1
          %s454 = smul.addr %s453, 2
          %s455 = scalar_lea.vmem [#allocation9], %s454
          %456 = dma.done %s452, 32
        $region68: #{tpu_custom_call.1} parent=63 // pred_fallthru
          _
        // Predicated region
        $region69: #{tpu_custom_call.1} parent=63 // pred_check
          %p457 = pneg %p176
        $region70: #{tpu_custom_call.1} parent=63 // pred_check_branch
          %459 = sbr.rel (%p457) target = $region72
        $region71: #{tpu_custom_call.1} parent=63 // pred_region
          %s460 = sand.u32 %s161, 1
          %s461 = scalar_lea.sflag [#allocation11], %s460
          %s462 = sand.u32 %s161, 1
          %s463 = smul.addr %s462, 8
          %s464 = scalar_lea.vmem [#allocation10], %s463
          %465 = dma.done %s461, 128
        $region72: #{tpu_custom_call.1} parent=63 // pred_fallthru
          _
      $region64: #{tpu_custom_call.1} parent=5 // pred_fallthru
        _
    $region6: #{tpu_custom_call.1} parent=1 // loop_footer
      %s27 = sadd.s32 1, %s23
    $region7: #{tpu_custom_call.1} parent=1 // loop_footer_branch
      %22 = sbr.rel target = $region3
    $region8: #{tpu_custom_call.1} parent=1 // loop_exit
      _
    %466 = vsyncpa [#allocation4], 1
    %s467 = scalar_lea.sflag [#allocation4], 1
    %468 = vsyncpa %s467, 1
    %469 = vsyncpa [#allocation7], 1
    %s470 = scalar_lea.sflag [#allocation7], 1
    %471 = vsyncpa %s470, 1
    %472 = vsyncpa [#allocation5], 1
    %s473 = scalar_lea.sflag [#allocation5], 1
    %474 = vsyncpa %s473, 1
    %475 = vsyncpa [#allocation11], 1
    %s476 = scalar_lea.sflag [#allocation11], 1
    %477 = vsyncpa %s476, 1

</llo_original>
